<compile_context>
chip_gen: v5e
topology: v5e:2x2
jax: 0.10.0
libtpu: 0.0.40
codegen_flags: <defaults>
</compile_context>

<pallas_src>
import jax
import jax.numpy as jnp
from jax.experimental import pallas as pl
from jax.experimental.pallas import tpu as pltpu

LN_EPS = 1e-5          # torch.nn.LayerNorm default eps
BF16 = jnp.bfloat16


def _layer_norm(v, g, b):
    mu = jnp.mean(v, axis=-1, keepdims=True)
    var = jnp.mean((v - mu) ** 2, axis=-1, keepdims=True)   # biased, like torch
    return (v - mu) * jax.lax.rsqrt(var + LN_EPS) * g + b


def _softmax_rows(v):
    m = jnp.max(v, axis=-1, keepdims=True)
    e = jnp.exp(v - m)
    return e * pl.reciprocal(jnp.sum(e, axis=-1, keepdims=True), approx=True)


def hebbian_kernel(stack_ref, wts_ref, w2_ref, prow_ref, b2_ref, decay_col_ref,
                   out_ref, wout_ref):
    B = stack_ref.shape[1]
    D = wts_ref.shape[-1]

    # ---- unpack the stacked buffers ----------------------------------------
    x        = stack_ref[0]
    prev_act = stack_ref[1]
    dop      = stack_ref[2]
    ser      = stack_ref[3]
    gab      = stack_ref[4]

    w    = wts_ref[0]
    wrec = wts_ref[1]
    w1   = wts_ref[2]

    prows = prow_ref[...]                       # (8, D) row-parameter tile
    ln_rec_g, ln_rec_b = prows[0:1], prows[1:2]
    ln_act_g, ln_act_b = prows[2:3], prows[3:4]
    b1, alpha = prows[4:5], prows[5:6]

    # ---- forward path (bf16 MXU operands, f32 accumulation) ----------------
    rec = jnp.dot(prev_act.astype(BF16), wrec.astype(BF16),
                  preferred_element_type=jnp.float32)
    rec = _layer_norm(rec, ln_rec_g, ln_rec_b)

    act = jnp.maximum(
        jnp.dot(x.astype(BF16), w.astype(BF16),
                preferred_element_type=jnp.float32) + rec, 0.0)
    act = _layer_norm(act, ln_act_g, ln_act_b)

    # ---- update_neuromodulators (single fused (D, 3D) second linear) -------
    h = jnp.maximum(
        jnp.dot(act.astype(BF16), w1.astype(BF16),
                preferred_element_type=jnp.float32) + b1, 0.0)
    pred = jnp.dot(h.astype(BF16), w2_ref[...].astype(BF16),
                   preferred_element_type=jnp.float32) + b2_ref[...]
    pred_d = pred[:, 0 * D:1 * D]
    pred_s = pred[:, 1 * D:2 * D]
    pred_g = pred[:, 2 * D:3 * D]

    inv_scale = pl.reciprocal(jnp.maximum(pred_s, 1e-6), approx=True)
    new_dop = jnp.tanh(dop + pred_d * inv_scale)
    new_ser = jax.nn.sigmoid(ser + pred_s)
    new_gab = jax.nn.sigmoid(gab + pred_g * inv_scale)

    out_ref[0] = act          # returned activations / new previous_activation
    out_ref[1] = rec          # new previous_recurrent_activation
    out_ref[2] = new_dop
    out_ref[3] = new_ser
    out_ref[4] = new_gab

    # ---- hebbian_update -----------------------------------------------------
    act_sm  = _softmax_rows(act)
    rec_sm  = _softmax_rows(rec)
    w_sm    = _softmax_rows(w)
    wrec_sm = _softmax_rows(wrec)

    # mean_b[ softmax(act)[b,i] * (alpha*dop*ser)[b,j] ] as one batch
    # contraction (1/B is exact for B=4, folded before the bf16 cast so the
    # shared rhs is built once for both outer products).
    dn = (((0,), (0,)), ((), ()))
    mod_alpha_b = ((alpha * new_dop * new_ser) * (1.0 / B)).astype(BF16)
    outer = jax.lax.dot_general(act_sm.astype(BF16), mod_alpha_b, dn,
                                preferred_element_type=jnp.float32)
    outer_rec = jax.lax.dot_general(rec_sm.astype(BF16), mod_alpha_b, dn,
                                    preferred_element_type=jnp.float32)

    # diag(scaled_decay) @ W  ==  row-wise scale of W.  Build the (D, 1)
    # column of batch-mean(gaba) with the same batch-contraction pattern
    # (keeps the scale on the sublane axis without an explicit transpose).
    gab_mean_col = jax.lax.dot_general(
        new_gab, jnp.full((B, 1), 1.0 / B, jnp.float32), dn,
        preferred_element_type=jnp.float32)                      # (D, 1)
    keep = 1.0 - decay_col_ref[...] * jax.nn.sigmoid(gab_mean_col)  # (D, 1)

    wout_ref[0] = w * keep + outer * w_sm            # updated hebbian_weights
    wout_ref[1] = wrec * keep + outer_rec * wrec_sm  # updated recurrent weights


@jax.jit
def hebbian_forward(x, params, state):
    """Runs one HebbianLayer.forward step. Returns (activations, new_state)."""
    B, D = x.shape
    f32 = jnp.float32

    # ---- host-side packing glue (layout only, no math) ----------------------
    stack = jnp.stack([
        x.astype(f32),
        state["previous_activation"].astype(f32),
        state["dopamine"].astype(f32),
        state["serotonin"].astype(f32),
        state["gaba"].astype(f32),
    ])
    wts = jnp.stack([
        params["hebbian_weights"].astype(f32),
        params["hebbian_recurrent_weights"].astype(f32),
        params["w1"].astype(f32),
    ])
    # nn.Linear(dim, 3*dim) + .view(-1, dim, 3).unbind(2) interleaves
    # (dopamine, serotonin, gaba) along the output axis; de-interleave here so
    # the kernel does one lane-dense (D, 3D) matmul and three static slices.
    w2 = params["w2"].astype(f32)
    b2 = params["b2"].astype(f32)
    w2_all = jnp.concatenate([w2[:, 0::3], w2[:, 1::3], w2[:, 2::3]], axis=1)
    b2_all = jnp.concatenate([b2[0::3], b2[1::3], b2[2::3]]).reshape(1, 3 * D)
    prows = jnp.stack([
        params["ln_rec_gamma"], params["ln_rec_beta"],
        params["ln_act_gamma"], params["ln_act_beta"],
        params["b1"], params["alpha"],
        jnp.zeros((D,), f32), jnp.zeros((D,), f32),   # pad to one (8, D) tile
    ]).astype(f32)
    decay_col = params["decay"].astype(f32).reshape(D, 1)

    inputs = (stack, wts, w2_all, prows, b2_all, decay_col)

    in_specs = [
        pl.BlockSpec((5, B, D), lambda i: (0, 0, 0)),
        pl.BlockSpec((3, D, D), lambda i: (0, 0, 0)),
        pl.BlockSpec((D, 3 * D), lambda i: (0, 0)),
        pl.BlockSpec((8, D), lambda i: (0, 0)),
        pl.BlockSpec((1, 3 * D), lambda i: (0, 0)),
        pl.BlockSpec((D, 1), lambda i: (0, 0)),
    ]
    out_shape = (
        jax.ShapeDtypeStruct((5, B, D), f32),   # act, rec, dopamine, serotonin, gaba
        jax.ShapeDtypeStruct((2, D, D), f32),   # updated W, W_rec
    )
    out_specs = (
        pl.BlockSpec((5, B, D), lambda i: (0, 0, 0)),
        pl.BlockSpec((2, D, D), lambda i: (0, 0, 0)),
    )

    grid_spec = pltpu.PrefetchScalarGridSpec(
        num_scalar_prefetch=0,
        grid=(1,),
        in_specs=in_specs,
        out_specs=out_specs,
    )

    out_stack, w_out = pl.pallas_call(
        hebbian_kernel,
        out_shape=out_shape,
        grid_spec=grid_spec,
        compiler_params=pltpu.CompilerParams(
            dimension_semantics=("arbitrary",),
            vmem_limit_bytes=32 * 1024 * 1024),
    )(*inputs)

    act = out_stack[0]
    new_state = dict(
        previous_activation=act,
        previous_recurrent_activation=out_stack[1],
        dopamine=out_stack[2],
        serotonin=out_stack[3],
        gaba=out_stack[4],
        hebbian_weights=w_out[0],
        hebbian_recurrent_weights=w_out[1],
    )
    return act, new_state


def _reference(x, params, state):
    """Pure-JAX replica of HebbianLayer.forward (correctness check).

    Mirrors the kernel's matmul-operand precision (bf16 inputs, f32
    accumulation) so the comparison isolates logic errors; everything else
    (LayerNorm, softmax, sigmoids, diag-decay) is exact f32 torch math.
    """
    B, D = x.shape

    def mm(a, b):
        return jnp.dot(a.astype(BF16), b.astype(BF16),
                       preferred_element_type=jnp.float32)

    rec = mm(state["previous_activation"], params["hebbian_recurrent_weights"])
    rec = _layer_norm(rec, params["ln_rec_gamma"], params["ln_rec_beta"])
    act = jnp.maximum(mm(x, params["hebbian_weights"]) + rec, 0.0)
    act = _layer_norm(act, params["ln_act_gamma"], params["ln_act_beta"])

    h = jnp.maximum(mm(act, params["w1"]) + params["b1"], 0.0)
    pred = (mm(h, params["w2"]) + params["b2"]).reshape(B, D, 3)
    pred_d, pred_s, pred_g = pred[..., 0], pred[..., 1], pred[..., 2]
    inv = 1.0 / jnp.maximum(pred_s, 1e-6)
    dop = jnp.tanh(state["dopamine"] + pred_d * inv)
    ser = jax.nn.sigmoid(state["serotonin"] + pred_s)
    gab = jax.nn.sigmoid(state["gaba"] + pred_g * inv)

    act_sm = jax.nn.softmax(act, axis=1)
    rec_sm = jax.nn.softmax(rec, axis=1)
    w_sm = jax.nn.softmax(params["hebbian_weights"], axis=1)
    wrec_sm = jax.nn.softmax(params["hebbian_recurrent_weights"], axis=1)
    mod_alpha = params["alpha"][None, :] * dop * ser
    a_sm = act_sm.astype(BF16).astype(jnp.float32)
    r_sm = rec_sm.astype(BF16).astype(jnp.float32)
    ma = mod_alpha.astype(BF16).astype(jnp.float32)
    upd = jnp.mean(a_sm[:, :, None] * w_sm[None] * ma[:, None, :], axis=0)
    upd_r = jnp.mean(r_sm[:, :, None] * wrec_sm[None] * ma[:, None, :], axis=0)
    scaled_decay = params["decay"] * jax.nn.sigmoid(gab.mean(axis=0))
    w_new = (params["hebbian_weights"] + upd
             - jnp.diag(scaled_decay) @ params["hebbian_weights"])
    wrec_new = (params["hebbian_recurrent_weights"] + upd_r
                - jnp.diag(scaled_decay) @ params["hebbian_recurrent_weights"])
    return act, rec, w_new, wrec_new, dop, ser, gab


if __name__ == "__main__":
    B, D = 4, 10   # module-level batch_size / dim from the PyTorch script

    key = jax.random.PRNGKey(0)
    ks = jax.random.split(key, 8)

    params = dict(
        hebbian_weights=jax.random.normal(ks[0], (D, D), jnp.float32) * 0.01,
        hebbian_recurrent_weights=jax.random.normal(ks[1], (D, D), jnp.float32) * 0.01,
        alpha=jnp.full((D,), 0.1, jnp.float32),
        decay=jnp.full((D,), 0.01, jnp.float32),
        ln_act_gamma=jnp.ones((D,), jnp.float32),
        ln_act_beta=jnp.zeros((D,), jnp.float32),
        ln_rec_gamma=jnp.ones((D,), jnp.float32),
        ln_rec_beta=jnp.zeros((D,), jnp.float32),
        w1=jax.random.normal(ks[2], (D, D), jnp.float32) * (1.0 / jnp.sqrt(D)),
        b1=jax.random.normal(ks[3], (D,), jnp.float32) * 0.01,
        w2=jax.random.normal(ks[4], (D, 3 * D), jnp.float32) * (1.0 / jnp.sqrt(D)),
        b2=jax.random.normal(ks[5], (3 * D,), jnp.float32) * 0.01,
    )
    state = dict(
        previous_activation=jnp.zeros((B, D), jnp.float32),
        dopamine=jnp.zeros((B, D), jnp.float32),
        serotonin=jnp.zeros((B, D), jnp.float32),
        gaba=jnp.zeros((B, D), jnp.float32),
    )
    x = jax.random.normal(ks[6], (B, D), jnp.float32)

    activations, new_state = hebbian_forward(x, params, state)
    jax.block_until_ready(activations)
    jax.block_until_ready(new_state)

    ref = _reference(x, params, state)
    got = (activations,
           new_state["previous_recurrent_activation"],
           new_state["hebbian_weights"],
           new_state["hebbian_recurrent_weights"],
           new_state["dopamine"],
           new_state["serotonin"],
           new_state["gaba"])
    for name, g, r in zip(
            ("act", "rec", "w", "wrec", "dopamine", "serotonin", "gaba"), got, ref):
        assert jnp.allclose(g, r, atol=1e-2, rtol=1e-2), (name, g, r)

    print("KERNEL_OK")
</pallas_src>

<mosaic_0001>
module attributes {stable_mosaic.version = 11 : i64} {
  func.func @hebbian_kernel(%arg0: i32, %arg1: memref<5x4x10xf32, #tpu.memory_space<vmem>>, %arg2: memref<3x10x10xf32, #tpu.memory_space<vmem>>, %arg3: memref<10x30xf32, #tpu.memory_space<vmem>>, %arg4: memref<8x10xf32, #tpu.memory_space<vmem>>, %arg5: memref<1x30xf32, #tpu.memory_space<vmem>>, %arg6: memref<10x1xf32, #tpu.memory_space<vmem>>, %arg7: memref<5x4x10xf32, #tpu.memory_space<vmem>>, %arg8: memref<2x10x10xf32, #tpu.memory_space<vmem>>) attributes {dimension_semantics = [#tpu.dimension_semantics<arbitrary>], iteration_bounds = array<i64: 1>, scalar_prefetch = 0 : i64, scratch_operands = 0 : i64, tpu.core_type = #tpu.core_type<tc>, window_params = [{pipeline_mode = #tpu.pipeline_mode<synchronous>, transform_indices = @transform_0, window_bounds = array<i64: 5, 4, 10>}, {pipeline_mode = #tpu.pipeline_mode<synchronous>, transform_indices = @transform_1, window_bounds = array<i64: 3, 10, 10>}, {pipeline_mode = #tpu.pipeline_mode<synchronous>, transform_indices = @transform_2, window_bounds = array<i64: 10, 30>}, {pipeline_mode = #tpu.pipeline_mode<synchronous>, transform_indices = @transform_3, window_bounds = array<i64: 8, 10>}, {pipeline_mode = #tpu.pipeline_mode<synchronous>, transform_indices = @transform_4, window_bounds = array<i64: 1, 30>}, {pipeline_mode = #tpu.pipeline_mode<synchronous>, transform_indices = @transform_5, window_bounds = array<i64: 10, 1>}, {pipeline_mode = #tpu.pipeline_mode<synchronous>, transform_indices = @transform_6, window_bounds = array<i64: 5, 4, 10>}, {pipeline_mode = #tpu.pipeline_mode<synchronous>, transform_indices = @transform_7, window_bounds = array<i64: 2, 10, 10>}]} {
    %c0 = arith.constant 0 : index
    %c0_0 = arith.constant 0 : index
    %c0_1 = arith.constant 0 : index
    %0 = vector.load %arg1[%c0, %c0_0, %c0_1] : memref<5x4x10xf32, #tpu.memory_space<vmem>>, vector<1x4x10xf32>
    %1 = vector.shape_cast %0 : vector<1x4x10xf32> to vector<4x10xf32>
    %c1 = arith.constant 1 : index
    %c0_2 = arith.constant 0 : index
    %c0_3 = arith.constant 0 : index
    %2 = vector.load %arg1[%c1, %c0_2, %c0_3] : memref<5x4x10xf32, #tpu.memory_space<vmem>>, vector<1x4x10xf32>
    %3 = vector.shape_cast %2 : vector<1x4x10xf32> to vector<4x10xf32>
    %c2 = arith.constant 2 : index
    %c0_4 = arith.constant 0 : index
    %c0_5 = arith.constant 0 : index
    %4 = vector.load %arg1[%c2, %c0_4, %c0_5] : memref<5x4x10xf32, #tpu.memory_space<vmem>>, vector<1x4x10xf32>
    %5 = vector.shape_cast %4 : vector<1x4x10xf32> to vector<4x10xf32>
    %c3 = arith.constant 3 : index
    %c0_6 = arith.constant 0 : index
    %c0_7 = arith.constant 0 : index
    %6 = vector.load %arg1[%c3, %c0_6, %c0_7] : memref<5x4x10xf32, #tpu.memory_space<vmem>>, vector<1x4x10xf32>
    %7 = vector.shape_cast %6 : vector<1x4x10xf32> to vector<4x10xf32>
    %c4 = arith.constant 4 : index
    %c0_8 = arith.constant 0 : index
    %c0_9 = arith.constant 0 : index
    %8 = vector.load %arg1[%c4, %c0_8, %c0_9] : memref<5x4x10xf32, #tpu.memory_space<vmem>>, vector<1x4x10xf32>
    %9 = vector.shape_cast %8 : vector<1x4x10xf32> to vector<4x10xf32>
    %c0_10 = arith.constant 0 : index
    %c0_11 = arith.constant 0 : index
    %c0_12 = arith.constant 0 : index
    %10 = vector.load %arg2[%c0_10, %c0_11, %c0_12] : memref<3x10x10xf32, #tpu.memory_space<vmem>>, vector<1x10x10xf32>
    %11 = vector.shape_cast %10 : vector<1x10x10xf32> to vector<10x10xf32>
    %c1_13 = arith.constant 1 : index
    %c0_14 = arith.constant 0 : index
    %c0_15 = arith.constant 0 : index
    %12 = vector.load %arg2[%c1_13, %c0_14, %c0_15] : memref<3x10x10xf32, #tpu.memory_space<vmem>>, vector<1x10x10xf32>
    %13 = vector.shape_cast %12 : vector<1x10x10xf32> to vector<10x10xf32>
    %c2_16 = arith.constant 2 : index
    %c0_17 = arith.constant 0 : index
    %c0_18 = arith.constant 0 : index
    %14 = vector.load %arg2[%c2_16, %c0_17, %c0_18] : memref<3x10x10xf32, #tpu.memory_space<vmem>>, vector<1x10x10xf32>
    %15 = vector.shape_cast %14 : vector<1x10x10xf32> to vector<10x10xf32>
    %c0_19 = arith.constant 0 : index
    %c0_20 = arith.constant 0 : index
    %16 = vector.load %arg4[%c0_19, %c0_20] : memref<8x10xf32, #tpu.memory_space<vmem>>, vector<8x10xf32>
    %17 = vector.extract_strided_slice %16 {offsets = [0, 0], sizes = [1, 10], strides = [1, 1]} : vector<8x10xf32> to vector<1x10xf32>
    %18 = vector.extract_strided_slice %16 {offsets = [1, 0], sizes = [1, 10], strides = [1, 1]} : vector<8x10xf32> to vector<1x10xf32>
    %19 = vector.extract_strided_slice %16 {offsets = [2, 0], sizes = [1, 10], strides = [1, 1]} : vector<8x10xf32> to vector<1x10xf32>
    %20 = vector.extract_strided_slice %16 {offsets = [3, 0], sizes = [1, 10], strides = [1, 1]} : vector<8x10xf32> to vector<1x10xf32>
    %21 = vector.extract_strided_slice %16 {offsets = [4, 0], sizes = [1, 10], strides = [1, 1]} : vector<8x10xf32> to vector<1x10xf32>
    %22 = vector.extract_strided_slice %16 {offsets = [5, 0], sizes = [1, 10], strides = [1, 1]} : vector<8x10xf32> to vector<1x10xf32>
    %23 = arith.truncf %3 : vector<4x10xf32> to vector<4x10xbf16>
    %24 = arith.truncf %13 : vector<10x10xf32> to vector<10x10xbf16>
    %cst = arith.constant dense<0.000000e+00> : vector<4x10xf32>
    %25 = tpu.matmul %23, %24, %cst {dimension_numbers = #tpu.dot_dimension_numbers<[1], [0], [0], [1], [0, 0, 1, 1], [], []>} : vector<4x10xbf16>, vector<10x10xbf16>, vector<4x10xf32> -> vector<4x10xf32>
    %cst_21 = arith.constant dense<0.000000e+00> : vector<4xf32>
    %26 = vector.multi_reduction <add>, %25, %cst_21 [1] : vector<4x10xf32> to vector<4xf32>
    %27 = vector.shape_cast %26 : vector<4xf32> to vector<4x1xf32>
    %cst_22 = arith.constant 1.000000e+01 : f32
    %28 = vector.broadcast %cst_22 : f32 to vector<4x1xf32>
    %29 = arith.divf %27, %28 : vector<4x1xf32>
    %30 = vector.broadcast %29 : vector<4x1xf32> to vector<4x10xf32>
    %31 = arith.subf %25, %30 : vector<4x10xf32>
    %32 = arith.mulf %31, %31 : vector<4x10xf32>
    %cst_23 = arith.constant dense<0.000000e+00> : vector<4xf32>
    %33 = vector.multi_reduction <add>, %32, %cst_23 [1] : vector<4x10xf32> to vector<4xf32>
    %34 = vector.shape_cast %33 : vector<4xf32> to vector<4x1xf32>
    %cst_24 = arith.constant 1.000000e+01 : f32
    %35 = vector.broadcast %cst_24 : f32 to vector<4x1xf32>
    %36 = arith.divf %34, %35 : vector<4x1xf32>
    %37 = vector.broadcast %29 : vector<4x1xf32> to vector<4x10xf32>
    %38 = arith.subf %25, %37 : vector<4x10xf32>
    %cst_25 = arith.constant 9.99999974E-6 : f32
    %39 = vector.broadcast %cst_25 : f32 to vector<4x1xf32>
    %40 = arith.addf %36, %39 : vector<4x1xf32>
    %41 = math.rsqrt %40 : vector<4x1xf32>
    %42 = vector.broadcast %41 : vector<4x1xf32> to vector<4x10xf32>
    %43 = arith.mulf %38, %42 : vector<4x10xf32>
    %44 = vector.broadcast %17 : vector<1x10xf32> to vector<4x10xf32>
    %45 = arith.mulf %43, %44 : vector<4x10xf32>
    %46 = vector.broadcast %18 : vector<1x10xf32> to vector<4x10xf32>
    %47 = arith.addf %45, %46 : vector<4x10xf32>
    %48 = arith.truncf %1 : vector<4x10xf32> to vector<4x10xbf16>
    %49 = arith.truncf %11 : vector<10x10xf32> to vector<10x10xbf16>
    %cst_26 = arith.constant dense<0.000000e+00> : vector<4x10xf32>
    %50 = tpu.matmul %48, %49, %cst_26 {dimension_numbers = #tpu.dot_dimension_numbers<[1], [0], [0], [1], [0, 0, 1, 1], [], []>} : vector<4x10xbf16>, vector<10x10xbf16>, vector<4x10xf32> -> vector<4x10xf32>
    %51 = arith.addf %50, %47 : vector<4x10xf32>
    %cst_27 = arith.constant 0.000000e+00 : f32
    %52 = vector.broadcast %cst_27 : f32 to vector<4x10xf32>
    %53 = arith.maximumf %51, %52 : vector<4x10xf32>
    %cst_28 = arith.constant dense<0.000000e+00> : vector<4xf32>
    %54 = vector.multi_reduction <add>, %53, %cst_28 [1] : vector<4x10xf32> to vector<4xf32>
    %55 = vector.shape_cast %54 : vector<4xf32> to vector<4x1xf32>
    %cst_29 = arith.constant 1.000000e+01 : f32
    %56 = vector.broadcast %cst_29 : f32 to vector<4x1xf32>
    %57 = arith.divf %55, %56 : vector<4x1xf32>
    %58 = vector.broadcast %57 : vector<4x1xf32> to vector<4x10xf32>
    %59 = arith.subf %53, %58 : vector<4x10xf32>
    %60 = arith.mulf %59, %59 : vector<4x10xf32>
    %cst_30 = arith.constant dense<0.000000e+00> : vector<4xf32>
    %61 = vector.multi_reduction <add>, %60, %cst_30 [1] : vector<4x10xf32> to vector<4xf32>
    %62 = vector.shape_cast %61 : vector<4xf32> to vector<4x1xf32>
    %cst_31 = arith.constant 1.000000e+01 : f32
    %63 = vector.broadcast %cst_31 : f32 to vector<4x1xf32>
    %64 = arith.divf %62, %63 : vector<4x1xf32>
    %65 = vector.broadcast %57 : vector<4x1xf32> to vector<4x10xf32>
    %66 = arith.subf %53, %65 : vector<4x10xf32>
    %cst_32 = arith.constant 9.99999974E-6 : f32
    %67 = vector.broadcast %cst_32 : f32 to vector<4x1xf32>
    %68 = arith.addf %64, %67 : vector<4x1xf32>
    %69 = math.rsqrt %68 : vector<4x1xf32>
    %70 = vector.broadcast %69 : vector<4x1xf32> to vector<4x10xf32>
    %71 = arith.mulf %66, %70 : vector<4x10xf32>
    %72 = vector.broadcast %19 : vector<1x10xf32> to vector<4x10xf32>
    %73 = arith.mulf %71, %72 : vector<4x10xf32>
    %74 = vector.broadcast %20 : vector<1x10xf32> to vector<4x10xf32>
    %75 = arith.addf %73, %74 : vector<4x10xf32>
    %76 = arith.truncf %75 : vector<4x10xf32> to vector<4x10xbf16>
    %77 = arith.truncf %15 : vector<10x10xf32> to vector<10x10xbf16>
    %cst_33 = arith.constant dense<0.000000e+00> : vector<4x10xf32>
    %78 = tpu.matmul %76, %77, %cst_33 {dimension_numbers = #tpu.dot_dimension_numbers<[1], [0], [0], [1], [0, 0, 1, 1], [], []>} : vector<4x10xbf16>, vector<10x10xbf16>, vector<4x10xf32> -> vector<4x10xf32>
    %79 = vector.broadcast %21 : vector<1x10xf32> to vector<4x10xf32>
    %80 = arith.addf %78, %79 : vector<4x10xf32>
    %cst_34 = arith.constant 0.000000e+00 : f32
    %81 = vector.broadcast %cst_34 : f32 to vector<4x10xf32>
    %82 = arith.maximumf %80, %81 : vector<4x10xf32>
    %83 = arith.truncf %82 : vector<4x10xf32> to vector<4x10xbf16>
    %c0_35 = arith.constant 0 : index
    %c0_36 = arith.constant 0 : index
    %84 = vector.load %arg3[%c0_35, %c0_36] : memref<10x30xf32, #tpu.memory_space<vmem>>, vector<10x30xf32>
    %85 = arith.truncf %84 : vector<10x30xf32> to vector<10x30xbf16>
    %cst_37 = arith.constant dense<0.000000e+00> : vector<4x30xf32>
    %86 = tpu.matmul %83, %85, %cst_37 {dimension_numbers = #tpu.dot_dimension_numbers<[1], [0], [0], [1], [0, 0, 1, 1], [], []>} : vector<4x10xbf16>, vector<10x30xbf16>, vector<4x30xf32> -> vector<4x30xf32>
    %c0_38 = arith.constant 0 : index
    %c0_39 = arith.constant 0 : index
    %87 = vector.load %arg5[%c0_38, %c0_39] : memref<1x30xf32, #tpu.memory_space<vmem>>, vector<1x30xf32>
    %88 = vector.broadcast %87 : vector<1x30xf32> to vector<4x30xf32>
    %89 = arith.addf %86, %88 : vector<4x30xf32>
    %90 = vector.extract_strided_slice %89 {offsets = [0, 0], sizes = [4, 10], strides = [1, 1]} : vector<4x30xf32> to vector<4x10xf32>
    %91 = vector.extract_strided_slice %89 {offsets = [0, 10], sizes = [4, 10], strides = [1, 1]} : vector<4x30xf32> to vector<4x10xf32>
    %92 = vector.extract_strided_slice %89 {offsets = [0, 20], sizes = [4, 10], strides = [1, 1]} : vector<4x30xf32> to vector<4x10xf32>
    %cst_40 = arith.constant 9.99999997E-7 : f32
    %93 = vector.broadcast %cst_40 : f32 to vector<4x10xf32>
    %94 = arith.maximumf %91, %93 : vector<4x10xf32>
    %95 = tpu.reciprocal %94 {approx = true} : vector<4x10xf32> -> vector<4x10xf32>
    %96 = arith.mulf %90, %95 : vector<4x10xf32>
    %97 = arith.addf %5, %96 : vector<4x10xf32>
    %98 = math.tanh %97 : vector<4x10xf32>
    %99 = arith.addf %7, %91 : vector<4x10xf32>
    %100 = arith.negf %99 : vector<4x10xf32>
    %101 = math.exp %100 : vector<4x10xf32>
    %cst_41 = arith.constant 1.000000e+00 : f32
    %102 = vector.broadcast %cst_41 : f32 to vector<4x10xf32>
    %103 = arith.addf %102, %101 : vector<4x10xf32>
    %104 = arith.divf %102, %103 : vector<4x10xf32>
    %105 = arith.mulf %92, %95 : vector<4x10xf32>
    %106 = arith.addf %9, %105 : vector<4x10xf32>
    %107 = arith.negf %106 : vector<4x10xf32>
    %108 = math.exp %107 : vector<4x10xf32>
    %cst_42 = arith.constant 1.000000e+00 : f32
    %109 = vector.broadcast %cst_42 : f32 to vector<4x10xf32>
    %110 = arith.addf %109, %108 : vector<4x10xf32>
    %111 = arith.divf %109, %110 : vector<4x10xf32>
    %c0_43 = arith.constant 0 : index
    %c0_44 = arith.constant 0 : index
    %c0_45 = arith.constant 0 : index
    %112 = vector.load %arg7[%c0_43, %c0_44, %c0_45] : memref<5x4x10xf32, #tpu.memory_space<vmem>>, vector<1x4x10xf32>
    %113 = vector.shape_cast %112 : vector<1x4x10xf32> to vector<4x10xf32>
    %114 = vector.shape_cast %75 : vector<4x10xf32> to vector<1x4x10xf32>
    tpu.vector_store %arg7[%c0_43, %c0_44, %c0_45], %114 {strides = array<i32>} : memref<5x4x10xf32, #tpu.memory_space<vmem>>, vector<1x4x10xf32>,
    %c1_46 = arith.constant 1 : index
    %c0_47 = arith.constant 0 : index
    %c0_48 = arith.constant 0 : index
    %115 = vector.load %arg7[%c1_46, %c0_47, %c0_48] : memref<5x4x10xf32, #tpu.memory_space<vmem>>, vector<1x4x10xf32>
    %116 = vector.shape_cast %115 : vector<1x4x10xf32> to vector<4x10xf32>
    %117 = vector.shape_cast %47 : vector<4x10xf32> to vector<1x4x10xf32>
    tpu.vector_store %arg7[%c1_46, %c0_47, %c0_48], %117 {strides = array<i32>} : memref<5x4x10xf32, #tpu.memory_space<vmem>>, vector<1x4x10xf32>,
    %c2_49 = arith.constant 2 : index
    %c0_50 = arith.constant 0 : index
    %c0_51 = arith.constant 0 : index
    %118 = vector.load %arg7[%c2_49, %c0_50, %c0_51] : memref<5x4x10xf32, #tpu.memory_space<vmem>>, vector<1x4x10xf32>
    %119 = vector.shape_cast %118 : vector<1x4x10xf32> to vector<4x10xf32>
    %120 = vector.shape_cast %98 : vector<4x10xf32> to vector<1x4x10xf32>
    tpu.vector_store %arg7[%c2_49, %c0_50, %c0_51], %120 {strides = array<i32>} : memref<5x4x10xf32, #tpu.memory_space<vmem>>, vector<1x4x10xf32>,
    %c3_52 = arith.constant 3 : index
    %c0_53 = arith.constant 0 : index
    %c0_54 = arith.constant 0 : index
    %121 = vector.load %arg7[%c3_52, %c0_53, %c0_54] : memref<5x4x10xf32, #tpu.memory_space<vmem>>, vector<1x4x10xf32>
    %122 = vector.shape_cast %121 : vector<1x4x10xf32> to vector<4x10xf32>
    %123 = vector.shape_cast %104 : vector<4x10xf32> to vector<1x4x10xf32>
    tpu.vector_store %arg7[%c3_52, %c0_53, %c0_54], %123 {strides = array<i32>} : memref<5x4x10xf32, #tpu.memory_space<vmem>>, vector<1x4x10xf32>,
    %c4_55 = arith.constant 4 : index
    %c0_56 = arith.constant 0 : index
    %c0_57 = arith.constant 0 : index
    %124 = vector.load %arg7[%c4_55, %c0_56, %c0_57] : memref<5x4x10xf32, #tpu.memory_space<vmem>>, vector<1x4x10xf32>
    %125 = vector.shape_cast %124 : vector<1x4x10xf32> to vector<4x10xf32>
    %126 = vector.shape_cast %111 : vector<4x10xf32> to vector<1x4x10xf32>
    tpu.vector_store %arg7[%c4_55, %c0_56, %c0_57], %126 {strides = array<i32>} : memref<5x4x10xf32, #tpu.memory_space<vmem>>, vector<1x4x10xf32>,
    %cst_58 = arith.constant dense<0xFF800000> : vector<4xf32>
    %127 = vector.multi_reduction <maximumf>, %75, %cst_58 [1] : vector<4x10xf32> to vector<4xf32>
    %128 = vector.shape_cast %127 : vector<4xf32> to vector<4x1xf32>
    %129 = vector.broadcast %128 : vector<4x1xf32> to vector<4x10xf32>
    %130 = arith.subf %75, %129 : vector<4x10xf32>
    %131 = math.exp %130 : vector<4x10xf32>
    %cst_59 = arith.constant dense<0.000000e+00> : vector<4xf32>
    %132 = vector.multi_reduction <add>, %131, %cst_59 [1] : vector<4x10xf32> to vector<4xf32>
    %133 = vector.shape_cast %132 : vector<4xf32> to vector<4x1xf32>
    %134 = tpu.reciprocal %133 {approx = true} : vector<4x1xf32> -> vector<4x1xf32>
    %135 = vector.broadcast %134 : vector<4x1xf32> to vector<4x10xf32>
    %136 = arith.mulf %131, %135 : vector<4x10xf32>
    %cst_60 = arith.constant dense<0xFF800000> : vector<4xf32>
    %137 = vector.multi_reduction <maximumf>, %47, %cst_60 [1] : vector<4x10xf32> to vector<4xf32>
    %138 = vector.shape_cast %137 : vector<4xf32> to vector<4x1xf32>
    %139 = vector.broadcast %138 : vector<4x1xf32> to vector<4x10xf32>
    %140 = arith.subf %47, %139 : vector<4x10xf32>
    %141 = math.exp %140 : vector<4x10xf32>
    %cst_61 = arith.constant dense<0.000000e+00> : vector<4xf32>
    %142 = vector.multi_reduction <add>, %141, %cst_61 [1] : vector<4x10xf32> to vector<4xf32>
    %143 = vector.shape_cast %142 : vector<4xf32> to vector<4x1xf32>
    %144 = tpu.reciprocal %143 {approx = true} : vector<4x1xf32> -> vector<4x1xf32>
    %145 = vector.broadcast %144 : vector<4x1xf32> to vector<4x10xf32>
    %146 = arith.mulf %141, %145 : vector<4x10xf32>
    %cst_62 = arith.constant dense<0xFF800000> : vector<10xf32>
    %147 = vector.multi_reduction <maximumf>, %11, %cst_62 [1] : vector<10x10xf32> to vector<10xf32>
    %148 = vector.shape_cast %147 : vector<10xf32> to vector<10x1xf32>
    %149 = vector.broadcast %148 : vector<10x1xf32> to vector<10x10xf32>
    %150 = arith.subf %11, %149 : vector<10x10xf32>
    %151 = math.exp %150 : vector<10x10xf32>
    %cst_63 = arith.constant dense<0.000000e+00> : vector<10xf32>
    %152 = vector.multi_reduction <add>, %151, %cst_63 [1] : vector<10x10xf32> to vector<10xf32>
    %153 = vector.shape_cast %152 : vector<10xf32> to vector<10x1xf32>
    %154 = tpu.reciprocal %153 {approx = true} : vector<10x1xf32> -> vector<10x1xf32>
    %155 = vector.broadcast %154 : vector<10x1xf32> to vector<10x10xf32>
    %156 = arith.mulf %151, %155 : vector<10x10xf32>
    %cst_64 = arith.constant dense<0xFF800000> : vector<10xf32>
    %157 = vector.multi_reduction <maximumf>, %13, %cst_64 [1] : vector<10x10xf32> to vector<10xf32>
    %158 = vector.shape_cast %157 : vector<10xf32> to vector<10x1xf32>
    %159 = vector.broadcast %158 : vector<10x1xf32> to vector<10x10xf32>
    %160 = arith.subf %13, %159 : vector<10x10xf32>
    %161 = math.exp %160 : vector<10x10xf32>
    %cst_65 = arith.constant dense<0.000000e+00> : vector<10xf32>
    %162 = vector.multi_reduction <add>, %161, %cst_65 [1] : vector<10x10xf32> to vector<10xf32>
    %163 = vector.shape_cast %162 : vector<10xf32> to vector<10x1xf32>
    %164 = tpu.reciprocal %163 {approx = true} : vector<10x1xf32> -> vector<10x1xf32>
    %165 = vector.broadcast %164 : vector<10x1xf32> to vector<10x10xf32>
    %166 = arith.mulf %161, %165 : vector<10x10xf32>
    %167 = vector.broadcast %22 : vector<1x10xf32> to vector<4x10xf32>
    %168 = arith.mulf %167, %98 : vector<4x10xf32>
    %169 = arith.mulf %168, %104 : vector<4x10xf32>
    %cst_66 = arith.constant 2.500000e-01 : f32
    %170 = vector.broadcast %cst_66 : f32 to vector<4x10xf32>
    %171 = arith.mulf %169, %170 : vector<4x10xf32>
    %172 = arith.truncf %171 : vector<4x10xf32> to vector<4x10xbf16>
    %173 = arith.truncf %136 : vector<4x10xf32> to vector<4x10xbf16>
    %cst_67 = arith.constant dense<0.000000e+00> : vector<10x10xf32>
    %174 = tpu.matmul %173, %172, %cst_67 {dimension_numbers = #tpu.dot_dimension_numbers<[0], [0], [1], [1], [0, 1, 1, 1], [], []>} : vector<4x10xbf16>, vector<4x10xbf16>, vector<10x10xf32> -> vector<10x10xf32>
    %175 = arith.truncf %146 : vector<4x10xf32> to vector<4x10xbf16>
    %cst_68 = arith.constant dense<0.000000e+00> : vector<10x10xf32>
    %176 = tpu.matmul %175, %172, %cst_68 {dimension_numbers = #tpu.dot_dimension_numbers<[0], [0], [1], [1], [0, 1, 1, 1], [], []>} : vector<4x10xbf16>, vector<4x10xbf16>, vector<10x10xf32> -> vector<10x10xf32>
    %cst_69 = arith.constant 2.500000e-01 : f32
    %177 = vector.broadcast %cst_69 : f32 to vector<4x1xf32>
    %cst_70 = arith.constant dense<0.000000e+00> : vector<10x1xf32>
    %178 = tpu.matmul %111, %177, %cst_70 {dimension_numbers = #tpu.dot_dimension_numbers<[0], [0], [1], [1], [0, 1, 1, 1], [], []>} : vector<4x10xf32>, vector<4x1xf32>, vector<10x1xf32> -> vector<10x1xf32>
    %c0_71 = arith.constant 0 : index
    %c0_72 = arith.constant 0 : index
    %179 = vector.load %arg6[%c0_71, %c0_72] : memref<10x1xf32, #tpu.memory_space<vmem>>, vector<10x1xf32>
    %180 = arith.negf %178 : vector<10x1xf32>
    %181 = math.exp %180 : vector<10x1xf32>
    %cst_73 = arith.constant 1.000000e+00 : f32
    %182 = vector.broadcast %cst_73 : f32 to vector<10x1xf32>
    %183 = arith.addf %182, %181 : vector<10x1xf32>
    %184 = arith.divf %182, %183 : vector<10x1xf32>
    %185 = arith.mulf %179, %184 : vector<10x1xf32>
    %cst_74 = arith.constant 1.000000e+00 : f32
    %186 = vector.broadcast %cst_74 : f32 to vector<10x1xf32>
    %187 = arith.subf %186, %185 : vector<10x1xf32>
    %188 = vector.broadcast %187 : vector<10x1xf32> to vector<10x10xf32>
    %189 = arith.mulf %11, %188 : vector<10x10xf32>
    %190 = arith.mulf %174, %156 : vector<10x10xf32>
    %191 = arith.addf %189, %190 : vector<10x10xf32>
    %c0_75 = arith.constant 0 : index
    %c0_76 = arith.constant 0 : index
    %c0_77 = arith.constant 0 : index
    %192 = vector.load %arg8[%c0_75, %c0_76, %c0_77] : memref<2x10x10xf32, #tpu.memory_space<vmem>>, vector<1x10x10xf32>
    %193 = vector.shape_cast %192 : vector<1x10x10xf32> to vector<10x10xf32>
    %194 = vector.shape_cast %191 : vector<10x10xf32> to vector<1x10x10xf32>
    tpu.vector_store %arg8[%c0_75, %c0_76, %c0_77], %194 {strides = array<i32>} : memref<2x10x10xf32, #tpu.memory_space<vmem>>, vector<1x10x10xf32>,
    %195 = vector.broadcast %187 : vector<10x1xf32> to vector<10x10xf32>
    %196 = arith.mulf %13, %195 : vector<10x10xf32>
    %197 = arith.mulf %176, %166 : vector<10x10xf32>
    %198 = arith.addf %196, %197 : vector<10x10xf32>
    %c1_78 = arith.constant 1 : index
    %c0_79 = arith.constant 0 : index
    %c0_80 = arith.constant 0 : index
    %199 = vector.load %arg8[%c1_78, %c0_79, %c0_80] : memref<2x10x10xf32, #tpu.memory_space<vmem>>, vector<1x10x10xf32>
    %200 = vector.shape_cast %199 : vector<1x10x10xf32> to vector<10x10xf32>
    %201 = vector.shape_cast %198 : vector<10x10xf32> to vector<1x10x10xf32>
    tpu.vector_store %arg8[%c1_78, %c0_79, %c0_80], %201 {strides = array<i32>} : memref<2x10x10xf32, #tpu.memory_space<vmem>>, vector<1x10x10xf32>,
    return
  }
  func.func @transform_0(%arg0: i32) -> (i32, i32, i32) {
    %c0_i32 = arith.constant 0 : i32
    %c0_i32_0 = arith.constant 0 : i32
    %c0_i32_1 = arith.constant 0 : i32
    %c0_i32_2 = arith.constant 0 : i32
    return %c0_i32, %c0_i32_0, %c0_i32_1 : i32, i32, i32
  }
  func.func @transform_1(%arg0: i32) -> (i32, i32, i32) {
    %c0_i32 = arith.constant 0 : i32
    %c0_i32_0 = arith.constant 0 : i32
    %c0_i32_1 = arith.constant 0 : i32
    %c0_i32_2 = arith.constant 0 : i32
    return %c0_i32, %c0_i32_0, %c0_i32_1 : i32, i32, i32
  }
  func.func @transform_2(%arg0: i32) -> (i32, i32) {
    %c0_i32 = arith.constant 0 : i32
    %c0_i32_0 = arith.constant 0 : i32
    %c0_i32_1 = arith.constant 0 : i32
    return %c0_i32, %c0_i32_0 : i32, i32
  }
  func.func @transform_3(%arg0: i32) -> (i32, i32) {
    %c0_i32 = arith.constant 0 : i32
    %c0_i32_0 = arith.constant 0 : i32
    %c0_i32_1 = arith.constant 0 : i32
    return %c0_i32, %c0_i32_0 : i32, i32
  }
  func.func @transform_4(%arg0: i32) -> (i32, i32) {
    %c0_i32 = arith.constant 0 : i32
    %c0_i32_0 = arith.constant 0 : i32
    %c0_i32_1 = arith.constant 0 : i32
    return %c0_i32, %c0_i32_0 : i32, i32
  }
  func.func @transform_5(%arg0: i32) -> (i32, i32) {
    %c0_i32 = arith.constant 0 : i32
    %c0_i32_0 = arith.constant 0 : i32
    %c0_i32_1 = arith.constant 0 : i32
    return %c0_i32, %c0_i32_0 : i32, i32
  }
  func.func @transform_6(%arg0: i32) -> (i32, i32, i32) {
    %c0_i32 = arith.constant 0 : i32
    %c0_i32_0 = arith.constant 0 : i32
    %c0_i32_1 = arith.constant 0 : i32
    %c0_i32_2 = arith.constant 0 : i32
    return %c0_i32, %c0_i32_0, %c0_i32_1 : i32, i32, i32
  }
  func.func @transform_7(%arg0: i32) -> (i32, i32, i32) {
    %c0_i32 = arith.constant 0 : i32
    %c0_i32_0 = arith.constant 0 : i32
    %c0_i32_1 = arith.constant 0 : i32
    %c0_i32_2 = arith.constant 0 : i32
    return %c0_i32, %c0_i32_0, %c0_i32_1 : i32, i32, i32
  }
}

</mosaic_0001>

<llo_original>
// kernel: hebbian_forward.1
$region0: #{hebbian_forward.1}
  #allocation0 [shape = 'u32[]', space=smem, size = 0x4, offset = 0x4, fixed_abs, tag = 'smem constant byte address 0x4 - core index']
  #allocation1 [shape = 'u32[72,128]{1,0:T(1,128)}', space=vmem, size = 0x9000, scoped, tag = 'internal scratch']
  %s0 = inlined_call_operand.vmem [shape: f32[5,4,10], index: 0, kind: input, shape index: {}]
  %s1 = inlined_call_operand.vmem [shape: f32[3,10,10], index: 1, kind: input, shape index: {}]
  %s2 = inlined_call_operand.vmem [shape: f32[10,30], index: 2, kind: input, shape index: {}]
  %s3 = inlined_call_operand.vmem [shape: f32[8,10], index: 3, kind: input, shape index: {}]
  %s4 = inlined_call_operand.vmem [shape: f32[1,30], index: 4, kind: input, shape index: {}]
  %s5 = inlined_call_operand.vmem [shape: f32[10,1], index: 5, kind: input, shape index: {}]
  %s6 = inlined_call_operand.vmem [shape: f32[5,4,10], index: 6, kind: output, shape index: {0}]
  %s7 = inlined_call_operand.vmem [shape: f32[2,10,10], index: 7, kind: output, shape index: {1}]
  %8 = xla_tuple %s6, %s7
  %s9 = sld [smem:[#allocation0]]
  $region42: #{hebbian_forward.1} parent=0
    _
  %s11 = ssub.s32 1, %s9
  %s12 = scalar_select 0, %s11, %s9
  // Predicated region
  $region2: #{hebbian_forward.1} parent=0 // pred_check
    _
  $region3: #{hebbian_forward.1} parent=0 // pred_check_branch
    %14 = sbr.rel (0) target = $region5
  $region4: #{hebbian_forward.1} parent=0 // pred_region
    _
  $region5: #{hebbian_forward.1} parent=0 // pred_fallthru
    _
  // Predicated region
  $region6: #{hebbian_forward.1} parent=0 // pred_check
    _
  $region7: #{hebbian_forward.1} parent=0 // pred_check_branch
    %16 = sbr.rel (0) target = $region9
  $region8: #{hebbian_forward.1} parent=0 // pred_region
    _
  $region9: #{hebbian_forward.1} parent=0 // pred_fallthru
    _
  // Predicated region
  $region10: #{hebbian_forward.1} parent=0 // pred_check
    _
  $region11: #{hebbian_forward.1} parent=0 // pred_check_branch
    %18 = sbr.rel (0) target = $region13
  $region12: #{hebbian_forward.1} parent=0 // pred_region
    _
  $region13: #{hebbian_forward.1} parent=0 // pred_fallthru
    _
  // Predicated region
  $region14: #{hebbian_forward.1} parent=0 // pred_check
    _
  $region15: #{hebbian_forward.1} parent=0 // pred_check_branch
    %20 = sbr.rel (0) target = $region17
  $region16: #{hebbian_forward.1} parent=0 // pred_region
    _
  $region17: #{hebbian_forward.1} parent=0 // pred_fallthru
    _
  // Predicated region
  $region18: #{hebbian_forward.1} parent=0 // pred_check
    _
  $region19: #{hebbian_forward.1} parent=0 // pred_check_branch
    %22 = sbr.rel (0) target = $region21
  $region20: #{hebbian_forward.1} parent=0 // pred_region
    _
  $region21: #{hebbian_forward.1} parent=0 // pred_fallthru
    _
  // Predicated region
  $region22: #{hebbian_forward.1} parent=0 // pred_check
    _
  $region23: #{hebbian_forward.1} parent=0 // pred_check_branch
    %24 = sbr.rel (0) target = $region25
  $region24: #{hebbian_forward.1} parent=0 // pred_region
    _
  $region25: #{hebbian_forward.1} parent=0 // pred_fallthru
    _
  %v26 = vld [vmem:[%s0] sm:$0xf]
  %s27 = scalar_lea.vmem %s0, 4
  %v28 = vld [vmem:[%s27] sm:$0xf]
  %s29 = scalar_lea.vmem %s0, 8
  %v30 = vld [vmem:[%s29] sm:$0xf]
  %s31 = scalar_lea.vmem %s0, 12
  %v32 = vld [vmem:[%s31] sm:$0xf]
  %s33 = scalar_lea.vmem %s0, 16
  %v34 = vld [vmem:[%s33] sm:$0xf]
  %v35 = vld [vmem:[%s1] sm:$0xff]
  %v36 = vld [vmem:[%s1 + $0x8] sm:$0x3]
  %s37 = scalar_lea.vmem %s1, 16
  %v38 = vld [vmem:[%s37] sm:$0xff]
  %v39 = vld [vmem:[%s37 + $0x8] sm:$0x3]
  %s40 = scalar_lea.vmem %s1, 32
  %v41 = vld [vmem:[%s40] sm:$0xff]
  %v42 = vld [vmem:[%s40 + $0x8] sm:$0x3]
  %v43 = vld [vmem:[%s3] sm:$0xff]
  %v44 = vpack.c.bf16 %v28, %v28
  %v45 = vpack.c.bf16 %v39, %v38
  %vm46 = vcmask 80896
  %v48 = vsel %vm46, %v44, 0
  %vm50 = vcmask 1044480
  %v52 = vsel %vm50, %v45, 0
  %54 = vmatpush.bf16.msra.mxu0 0
  %55 = vmatpush.bf16.msra.mxu0 0
  %56 = vmatpush.bf16.msra.mxu0 0
  %57 = vmatpush.bf16.msra.mxu0 0
  %58 = vmatpush.bf16.msra.mxu0 0
  %59 = vmatpush.bf16.msra.mxu0 0
  %60 = vmatpush.bf16.msra.mxu0 0
  %61 = vmatpush.bf16.msra.mxu0 %v52
  %62 = vmatmul.bf16.gmra.mxu0 %v48
  %v63 = vpop.f32.mrf.mxu0
  %v64 = vadd.f32 0.0, %v63
  %v65 = vpop.f32.mrf.mxu0
  %66 = vdwg.mxu0
  %vm67 = vcmask 76800
  %v68 = vsel %vm67, %v64, 0.0
  %69 = vadd.xlane.f32.xlu0 %v68
  %v70 = vpop.xlane.xlu0 %69
  %v71 = vrcp.pop 10.0
  %v72 = vmul.f32 10.0, %v71
  %v73 = vsub.f32 1.0, %v72
  %v74 = vmul.f32 %v71, %v73
  %v75 = vadd.f32 %v71, %v74
  %vm76 = vweird.f32 %v71
  %v77 = vsel %vm76, %v71, %v75
  %v78 = vmul.f32 %v70, %v77
  %v79 = vsub.f32 %v64, %v78
  %v80 = vmul.f32 %v79, %v79
  %v81 = vsel %vm67, %v80, 0.0
  %82 = vadd.xlane.f32.xlu0 %v81
  %v83 = vpop.xlane.xlu0 %82
  %v84 = vmul.f32 %v83, %v77
  %v85 = vadd.f32 %v84, 1e-05
  %v86 = vrsqrt.pop %v85
  %v87 = vmul.f32 %v86, %v85
  %v88 = vmul.f32 %v87, %v86
  %v89 = vmul.f32 0.5, %v88
  %v90 = vsub.f32 1.5, %v89
  %v91 = vmul.f32 %v86, %v90
  %vm92 = vweird.f32 %v85
  %vm93 = vweird.f32 %v86
  %vm94 = vmor %vm92, %vm93
  %v95 = vsel %vm94, %v86, %v91
  %v96 = vmul.f32 %v79, %v95
  %v97 = vperm.slane %v43, 0
  %v98 = vmul.f32 %v96, %v97
  %v99 = vperm.slane %v43, 1
  %v100 = vadd.f32 %v98, %v99
  %v101 = vpack.c.bf16 %v26, %v26
  %v102 = vpack.c.bf16 %v36, %v35
  %v104 = vsel %vm46, %v101, 0
  %v107 = vsel %vm50, %v102, 0
  %109 = vmatpush.bf16.msra.mxu0 0
  %110 = vmatpush.bf16.msra.mxu0 0
  %111 = vmatpush.bf16.msra.mxu0 0
  %112 = vmatpush.bf16.msra.mxu0 0
  %113 = vmatpush.bf16.msra.mxu0 0
  %114 = vmatpush.bf16.msra.mxu0 0
  %115 = vmatpush.bf16.msra.mxu0 0
  %116 = vmatpush.bf16.msra.mxu0 %v107
  %117 = vmatmul.bf16.gmra.mxu0 %v104
  %v118 = vpop.f32.mrf.mxu0
  %v119 = vadd.f32 %v100, %v118
  %v120 = vpop.f32.mrf.mxu0
  %121 = vdwg.mxu0
  %v122 = vmax.f32 %v119, 0.0
  %v123 = vsel %vm67, %v122, 0.0
  %124 = vadd.xlane.f32.xlu0 %v123
  %v125 = vpop.xlane.xlu0 %124
  %v126 = vmul.f32 %v125, %v77
  %v127 = vsub.f32 %v122, %v126
  %v128 = vmul.f32 %v127, %v127
  %v129 = vsel %vm67, %v128, 0.0
  %130 = vadd.xlane.f32.xlu0 %v129
  %v131 = vpop.xlane.xlu0 %130
  %v132 = vmul.f32 %v131, %v77
  %v133 = vadd.f32 %v132, 1e-05
  %v134 = vrsqrt.pop %v133
  %v135 = vmul.f32 %v134, %v133
  %v136 = vmul.f32 %v135, %v134
  %v137 = vmul.f32 0.5, %v136
  %v138 = vsub.f32 1.5, %v137
  %v139 = vmul.f32 %v134, %v138
  %vm140 = vweird.f32 %v133
  %vm141 = vweird.f32 %v134
  %vm142 = vmor %vm140, %vm141
  %v143 = vsel %vm142, %v134, %v139
  %v144 = vmul.f32 %v127, %v143
  %v145 = vperm.slane %v43, 2
  %v146 = vmul.f32 %v144, %v145
  %v147 = vperm.slane %v43, 3
  %v148 = vadd.f32 %v146, %v147
  %v149 = vpack.c.bf16 %v148, %v148
  %v150 = vpack.c.bf16 %v42, %v41
  %v151 = vperm.slane %v43, 4
  %v153 = vsel %vm46, %v149, 0
  %v156 = vsel %vm50, %v150, 0
  %158 = vmatpush.bf16.msra.mxu0 0
  %159 = vmatpush.bf16.msra.mxu0 0
  %160 = vmatpush.bf16.msra.mxu0 0
  %161 = vmatpush.bf16.msra.mxu0 0
  %162 = vmatpush.bf16.msra.mxu0 0
  %163 = vmatpush.bf16.msra.mxu0 0
  %164 = vmatpush.bf16.msra.mxu0 0
  %165 = vmatpush.bf16.msra.mxu0 %v156
  %166 = vmatmul.bf16.gmra.mxu0 %v153
  %v167 = vpop.f32.mrf.mxu0
  %v168 = vadd.f32 %v151, %v167
  %v169 = vpop.f32.mrf.mxu0
  %170 = vdwg.mxu0
  %v171 = vmax.f32 %v168, 0.0
  %v172 = vpack.c.bf16 %v171, %v171
  %v173 = vld [vmem:[%s2] sm:$0xff]
  %v174 = vld [vmem:[%s2 + $0x8] sm:$0x3]
  %v175 = vpack.c.bf16 %v174, %v173
  %v176 = vld [vmem:[%s4] sm:$0x1]
  %v178 = vperm.slane %v176, 0
  %v181 = vsel %vm46, %v172, 0
  %v184 = vsel %vm50, %v175, 0
  %186 = vmatpush.bf16.msra.mxu0 0
  %187 = vmatpush.bf16.msra.mxu0 0
  %188 = vmatpush.bf16.msra.mxu0 0
  %189 = vmatpush.bf16.msra.mxu0 0
  %190 = vmatpush.bf16.msra.mxu0 0
  %191 = vmatpush.bf16.msra.mxu0 0
  %192 = vmatpush.bf16.msra.mxu0 0
  %193 = vmatpush.bf16.msra.mxu0 %v184
  %194 = vmatmul.bf16.gmra.mxu0 %v181
  %v195 = vpop.f32.mrf.mxu0
  %v196 = vadd.f32 %v178, %v195
  %v197 = vpop.f32.mrf.mxu0
  %198 = vdwg.mxu0
  %v199 = vmax.f32 %v196, 1e-06
  %v200 = vrcp.pop %v199
  %202 = vrot.lane.b32.xlu0 %v200, 118
  %v203 = vpop.permute.xlu0 %202
  %v205 = vmul.f32 %v196, %v203
  %v206 = vadd.f32 %v30, %v205
  %v207 = vtanh.pop %v206
  %209 = vrot.lane.b32.xlu0 %v196, 118
  %v210 = vpop.permute.xlu0 %209
  %v212 = vadd.f32 %v32, %v210
  %v213 = vxor.u32 %v212, 2147483648
  %v214 = vmul.f32 %v213, 1.442695
  %v215 = vpow.pop %v214
  %v216 = vadd.f32 %v215, 1.0
  %v217 = vrcp.pop %v216
  %v218 = vmul.f32 %v216, %v217
  %v219 = vsub.f32 1.0, %v218
  %v220 = vmul.f32 %v217, %v219
  %v221 = vadd.f32 %v217, %v220
  %vm222 = vweird.f32 %v216
  %vm223 = vweird.f32 %v217
  %vm224 = vmor %vm222, %vm223
  %v225 = vsel %vm224, %v217, %v221
  %v226 = vand.u32 2147483647, %v216
  %vm227 = vcmp.eq.f32.partialorder %v226, 8.507059e+37
  %v228 = vand.u32 %v216, 2147483648
  %v229 = vor.u32 1.1754944e-38, %v228
  %v230 = vsel %vm227, %v229, %v225
  %v231 = vmul.f32 1.0, %v230
  %232 = vrot.lane.b32.xlu0 %v200, 10
  %v233 = vpop.permute.xlu0 %232
  %v235 = vmul.f32 %v196, %v233
  %237 = vrot.lane.b32.xlu0 %v235, 108
  %v238 = vpop.permute.xlu0 %237
  %v240 = vadd.f32 %v34, %v238
  %v241 = vxor.u32 %v240, 2147483648
  %v242 = vmul.f32 %v241, 1.442695
  %v243 = vpow.pop %v242
  %v244 = vadd.f32 %v243, 1.0
  %v245 = vrcp.pop %v244
  %v246 = vmul.f32 %v244, %v245
  %v247 = vsub.f32 1.0, %v246
  %v248 = vmul.f32 %v245, %v247
  %v249 = vadd.f32 %v245, %v248
  %vm250 = vweird.f32 %v244
  %vm251 = vweird.f32 %v245
  %vm252 = vmor %vm250, %vm251
  %v253 = vsel %vm252, %v245, %v249
  %v254 = vand.u32 2147483647, %v244
  %vm255 = vcmp.eq.f32.partialorder %v254, 8.507059e+37
  %v256 = vand.u32 %v244, 2147483648
  %v257 = vor.u32 1.1754944e-38, %v256
  %v258 = vsel %vm255, %v257, %v253
  %v259 = vmul.f32 1.0, %v258
  %260 = vst.msk [vmem:[%s6] sm:$0xf] %vm67, %v148
  %s261 = scalar_lea.vmem %s6, 4
  %262 = vst.msk [vmem:[%s261] sm:$0xf] %vm67, %v100
  %s263 = scalar_lea.vmem %s6, 8
  %264 = vst.msk [vmem:[%s263] sm:$0xf] %vm67, %v207
  %s265 = scalar_lea.vmem %s6, 12
  %266 = vst.msk [vmem:[%s265] sm:$0xf] %vm67, %v231
  %s267 = scalar_lea.vmem %s6, 16
  %268 = vst.msk [vmem:[%s267] sm:$0xf] %vm67, %v259
  %v269 = vsel %vm67, %v148, -inf
  %270 = vmax.xlane.f32.xlu0 %v269
  %v271 = vpop.xlane.xlu0 %270
  %v272 = vsub.f32 %v148, %v271
  %v273 = vmul.f32 %v272, 1.442695
  %v274 = vpow.pop %v273
  %v275 = vsel %vm67, %v274, 0.0
  %276 = vadd.xlane.f32.xlu0 %v275
  %v277 = vpop.xlane.xlu0 %276
  %v278 = vrcp.pop %v277
  %v279 = vmul.f32 %v274, %v278
  %v280 = vsel %vm67, %v100, -inf
  %281 = vmax.xlane.f32.xlu0 %v280
  %v282 = vpop.xlane.xlu0 %281
  %v283 = vsub.f32 %v100, %v282
  %v284 = vmul.f32 %v283, 1.442695
  %v285 = vpow.pop %v284
  %v286 = vsel %vm67, %v285, 0.0
  %287 = vadd.xlane.f32.xlu0 %v286
  %v288 = vpop.xlane.xlu0 %287
  %v289 = vrcp.pop %v288
  %v290 = vmul.f32 %v285, %v289
  %v291 = vsel %vm46, %v35, -inf
  %292 = vmax.xlane.f32.xlu0 %v291
  %v293 = vpop.xlane.xlu0 %292
  %vm294 = vcmask 74752
  %v295 = vsel %vm294, %v36, -inf
  %296 = vmax.xlane.f32.xlu0 %v295
  %v297 = vpop.xlane.xlu0 %296
  %v298 = vsub.f32 %v35, %v293
  %v299 = vsub.f32 %v36, %v297
  %v300 = vmul.f32 %v298, 1.442695
  %v301 = vpow.pop %v300
  %v302 = vmul.f32 %v299, 1.442695
  %v303 = vpow.pop %v302
  %v304 = vsel %vm46, %v301, 0.0
  %305 = vadd.xlane.f32.xlu0 %v304
  %v306 = vpop.xlane.xlu0 %305
  %v307 = vsel %vm294, %v303, 0.0
  %308 = vadd.xlane.f32.xlu0 %v307
  %v309 = vpop.xlane.xlu0 %308
  %v310 = vrcp.pop %v306
  %v311 = vrcp.pop %v309
  %v312 = vmul.f32 %v301, %v310
  %v313 = vmul.f32 %v303, %v311
  %v314 = vsel %vm46, %v38, -inf
  %315 = vmax.xlane.f32.xlu0 %v314
  %v316 = vpop.xlane.xlu0 %315
  %v317 = vsel %vm294, %v39, -inf
  %318 = vmax.xlane.f32.xlu0 %v317
  %v319 = vpop.xlane.xlu0 %318
  %v320 = vsub.f32 %v38, %v316
  %v321 = vsub.f32 %v39, %v319
  %v322 = vmul.f32 %v320, 1.442695
  %v323 = vpow.pop %v322
  %v324 = vmul.f32 %v321, 1.442695
  %v325 = vpow.pop %v324
  %v326 = vsel %vm46, %v323, 0.0
  %327 = vadd.xlane.f32.xlu0 %v326
  %v328 = vpop.xlane.xlu0 %327
  %v329 = vsel %vm294, %v325, 0.0
  %330 = vadd.xlane.f32.xlu0 %v329
  %v331 = vpop.xlane.xlu0 %330
  %v332 = vrcp.pop %v328
  %v333 = vrcp.pop %v331
  %v334 = vmul.f32 %v323, %v332
  %v335 = vmul.f32 %v325, %v333
  %v336 = vperm.slane %v43, 5
  %v337 = vmul.f32 %v336, %v207
  %v338 = vmul.f32 %v337, %v231
  %v339 = vmul.f32 %v338, 0.25
  %v340 = vpack.c.bf16 %v339, %v339
  %v341 = vpack.c.bf16 %v279, %v279
  %342 = vxpose.xlu0.c.b16.start [1/8] %v341, 128
  %343 = vxpose.xlu0.c.b16.cont [2/8] 0, 128
  %344 = vxpose.xlu0.c.b16.cont [3/8] 0, 128
  %345 = vxpose.xlu0.c.b16.cont [4/8] 0, 128
  %346 = vxpose.xlu0.c.b16.cont [5/8] 0, 128
  %347 = vxpose.xlu0.c.b16.cont [6/8] 0, 128
  %348 = vxpose.xlu0.c.b16.cont [7/8] 0, 128
  %349 = vxpose.xlu0.c.b16.end [8/8] 0, 128
  %v350 = vpop.trf.xlu0
  %v351 = vpop.trf.xlu0
  %v352 = vpop.trf.xlu0
  %v353 = vpop.trf.xlu0
  %v354 = vpop.trf.xlu0
  %v355 = vpop.trf.xlu0
  %v356 = vpop.trf.xlu0
  %v357 = vpop.trf.xlu0
  %vm358 = vcmask 31744
  %v360 = vsel %vm358, %v350, 0
  %vm362 = vcmask 1041408
  %v364 = vsel %vm362, %v340, 0
  %366 = vmatpush.bf16.msra.mxu0 0
  %367 = vmatpush.bf16.msra.mxu0 0
  %368 = vmatpush.bf16.msra.mxu0 0
  %369 = vmatpush.bf16.msra.mxu0 0
  %370 = vmatpush.bf16.msra.mxu0 0
  %371 = vmatpush.bf16.msra.mxu0 0
  %372 = vmatpush.bf16.msra.mxu0 0
  %373 = vmatpush.bf16.msra.mxu0 %v364
  %374 = vmatmul.bf16.gmra.mxu0 %v360
  %v375 = vpop.f32.mrf.mxu0
  %v376 = vadd.f32 0.0, %v375
  %v377 = vpop.f32.mrf.mxu0
  %v378 = vadd.f32 0.0, %v377
  %379 = vdwg.mxu0
  %v380 = vpack.c.bf16 %v290, %v290
  %381 = vxpose.xlu0.c.b16.start [1/8] %v380, 128
  %382 = vxpose.xlu0.c.b16.cont [2/8] 0, 128
  %383 = vxpose.xlu0.c.b16.cont [3/8] 0, 128
  %384 = vxpose.xlu0.c.b16.cont [4/8] 0, 128
  %385 = vxpose.xlu0.c.b16.cont [5/8] 0, 128
  %386 = vxpose.xlu0.c.b16.cont [6/8] 0, 128
  %387 = vxpose.xlu0.c.b16.cont [7/8] 0, 128
  %388 = vxpose.xlu0.c.b16.end [8/8] 0, 128
  %v389 = vpop.trf.xlu0
  %v390 = vpop.trf.xlu0
  %v391 = vpop.trf.xlu0
  %v392 = vpop.trf.xlu0
  %v393 = vpop.trf.xlu0
  %v394 = vpop.trf.xlu0
  %v395 = vpop.trf.xlu0
  %v396 = vpop.trf.xlu0
  %v398 = vsel %vm358, %v389, 0
  %400 = vmatpush.bf16.msra.mxu0 0
  %401 = vmatpush.bf16.msra.mxu0 0
  %402 = vmatpush.bf16.msra.mxu0 0
  %403 = vmatpush.bf16.msra.mxu0 0
  %404 = vmatpush.bf16.msra.mxu0 0
  %405 = vmatpush.bf16.msra.mxu0 0
  %406 = vmatpush.bf16.msra.mxu0 0
  %407 = vmatpush.bf16.msra.mxu0 %v364
  %408 = vmatmul.bf16.gmra.mxu0 %v398
  %v409 = vpop.f32.mrf.mxu0
  %v410 = vadd.f32 0.0, %v409
  %v411 = vpop.f32.mrf.mxu0
  %v412 = vadd.f32 0.0, %v411
  %413 = vdwg.mxu0
  %414 = vxpose.xlu0.b32.start [1/16] %v259, 128
  %415 = vxpose.xlu0.b32.cont [2/16] 0.0, 128
  %416 = vxpose.xlu0.b32.cont [3/16] 0.0, 128
  %417 = vxpose.xlu0.b32.cont [4/16] 0.0, 128
  %418 = vxpose.xlu0.b32.cont [5/16] 0.0, 128
  %419 = vxpose.xlu0.b32.cont [6/16] 0.0, 128
  %420 = vxpose.xlu0.b32.cont [7/16] 0.0, 128
  %421 = vxpose.xlu0.b32.cont [8/16] 0.0, 128
  %422 = vxpose.xlu0.b32.cont [9/16] 0.0, 128
  %423 = vxpose.xlu0.b32.cont [10/16] 0.0, 128
  %424 = vxpose.xlu0.b32.cont [11/16] 0.0, 128
  %425 = vxpose.xlu0.b32.cont [12/16] 0.0, 128
  %426 = vxpose.xlu0.b32.cont [13/16] 0.0, 128
  %427 = vxpose.xlu0.b32.cont [14/16] 0.0, 128
  %428 = vxpose.xlu0.b32.cont [15/16] 0.0, 128
  %429 = vxpose.xlu0.b32.end [16/16] 0.0, 128
  %v430 = vpop.trf.xlu0
  %v431 = vpop.trf.xlu0
  %v432 = vpop.trf.xlu0
  %v433 = vpop.trf.xlu0
  %v434 = vpop.trf.xlu0
  %v435 = vpop.trf.xlu0
  %v436 = vpop.trf.xlu0
  %v437 = vpop.trf.xlu0
  %v438 = vpop.trf.xlu0
  %v439 = vpop.trf.xlu0
  %v440 = vpop.trf.xlu0
  %v441 = vpop.trf.xlu0
  %v442 = vpop.trf.xlu0
  %v443 = vpop.trf.xlu0
  %v444 = vpop.trf.xlu0
  %v445 = vpop.trf.xlu0
  %v447 = vsel %vm358, %v430, 0
  %v450 = vsel %vm358, %v431, 0
  %vm452 = vcmask 1043456
  %v454 = vsel %vm452, 0.25, 0
  %456 = vmatpush.msra.mxu0 0.0
  %457 = vmatpush.msra.mxu0 0.0
  %458 = vmatpush.msra.mxu0 0.0
  %459 = vmatpush.msra.mxu0 0.0
  %460 = vmatpush.msra.mxu0 0.0
  %461 = vmatpush.msra.mxu0 0.0
  %462 = vmatpush.msra.mxu0 0.0
  %463 = vmatpush.msra.mxu0 0.0
  %464 = vmatpush.msra.mxu0 0.0
  %465 = vmatpush.msra.mxu0 0.0
  %466 = vmatpush.msra.mxu0 0.0
  %467 = vmatpush.msra.mxu0 0.0
  %468 = vmatpush.msra.mxu0 0.0
  %469 = vmatpush.msra.mxu0 0.0
  %470 = vmatpush.msra.mxu0 0.0
  %471 = vmatpush.msra.mxu0 %v454
  %472 = vmatmul.f32.gmra.mxu0 %v447
  %v473 = vpop.f32.mrf.mxu0
  %v474 = vadd.f32 0.0, %v473
  %475 = vmatmul.f32.gmra.mxu0 %v450
  %v476 = vpop.f32.mrf.mxu0
  %v477 = vadd.f32 0.0, %v476
  %478 = vdwg.mxu0
  %v479 = vld [vmem:[%s5] sm:$0xff]
  %v480 = vld [vmem:[%s5 + $0x8] sm:$0x3]
  %v481 = vxor.u32 %v474, 2147483648
  %v482 = vxor.u32 %v477, 2147483648
  %v483 = vmul.f32 %v481, 1.442695
  %v484 = vpow.pop %v483
  %v485 = vmul.f32 %v482, 1.442695
  %v486 = vpow.pop %v485
  %v487 = vadd.f32 %v484, 1.0
  %v488 = vadd.f32 %v486, 1.0
  %v489 = vrcp.pop %v487
  %v490 = vmul.f32 %v487, %v489
  %v491 = vsub.f32 1.0, %v490
  %v492 = vmul.f32 %v489, %v491
  %v493 = vadd.f32 %v489, %v492
  %vm494 = vweird.f32 %v487
  %vm495 = vweird.f32 %v489
  %vm496 = vmor %vm494, %vm495
  %v497 = vsel %vm496, %v489, %v493
  %v498 = vand.u32 2147483647, %v487
  %vm499 = vcmp.eq.f32.partialorder %v498, 8.507059e+37
  %v500 = vand.u32 %v487, 2147483648
  %v501 = vor.u32 1.1754944e-38, %v500
  %v502 = vsel %vm499, %v501, %v497
  %v503 = vmul.f32 1.0, %v502
  %v504 = vrcp.pop %v488
  %v505 = vmul.f32 %v488, %v504
  %v506 = vsub.f32 1.0, %v505
  %v507 = vmul.f32 %v504, %v506
  %v508 = vadd.f32 %v504, %v507
  %vm509 = vweird.f32 %v488
  %vm510 = vweird.f32 %v504
  %vm511 = vmor %vm509, %vm510
  %v512 = vsel %vm511, %v504, %v508
  %v513 = vand.u32 2147483647, %v488
  %vm514 = vcmp.eq.f32.partialorder %v513, 8.507059e+37
  %v515 = vand.u32 %v488, 2147483648
  %v516 = vor.u32 1.1754944e-38, %v515
  %v517 = vsel %vm514, %v516, %v512
  %v518 = vmul.f32 1.0, %v517
  %v519 = vmul.f32 %v479, %v503
  %v520 = vmul.f32 %v480, %v518
  %v521 = vsub.f32 1.0, %v519
  %v522 = vsub.f32 1.0, %v520
  %524 = vset.pattern.permute.xlu0 0
  %525 = vperm.xlu0 %524, %v521
  %v526 = vpop.permute.xlu0 %525
  %529 = vset.pattern.permute.xlu0 0
  %530 = vperm.xlu0 %529, %v522
  %v531 = vpop.permute.xlu0 %530
  %v533 = vmul.f32 %v35, %v526
  %v534 = vmul.f32 %v36, %v531
  %v535 = vmul.f32 %v376, %v312
  %v536 = vmul.f32 %v378, %v313
  %v537 = vadd.f32 %v533, %v535
  %v538 = vadd.f32 %v534, %v536
  %539 = vst.msk [vmem:[%s7] sm:$0xff] %vm46, %v537
  %540 = vst.msk [vmem:[%s7 + $0x8] sm:$0x3] %vm294, %v538
  %v541 = vmul.f32 %v38, %v526
  %v542 = vmul.f32 %v39, %v531
  %v543 = vmul.f32 %v410, %v334
  %v544 = vmul.f32 %v412, %v335
  %v545 = vadd.f32 %v541, %v543
  %v546 = vadd.f32 %v542, %v544
  %s547 = scalar_lea.vmem %s7, 16
  %548 = vst.msk [vmem:[%s547] sm:$0xff] %vm46, %v545
  %549 = vst.msk [vmem:[%s547 + $0x8] sm:$0x3] %vm294, %v546
  // Predicated region
  $region26: #{hebbian_forward.1} parent=0 // pred_check
    _
  $region27: #{hebbian_forward.1} parent=0 // pred_check_branch
    %551 = sbr.rel (0) target = $region29
  $region28: #{hebbian_forward.1} parent=0 // pred_region
    _
  $region29: #{hebbian_forward.1} parent=0 // pred_fallthru
    _
  // Predicated region
  $region30: #{hebbian_forward.1} parent=0 // pred_check
    _
  $region31: #{hebbian_forward.1} parent=0 // pred_check_branch
    %553 = sbr.rel (0) target = $region33
  $region32: #{hebbian_forward.1} parent=0 // pred_region
    _
  $region33: #{hebbian_forward.1} parent=0 // pred_fallthru
    _
  // Predicated region
  $region34: #{hebbian_forward.1} parent=0 // pred_check
    _
  $region35: #{hebbian_forward.1} parent=0 // pred_check_branch
    %555 = sbr.rel (0) target = $region37
  $region36: #{hebbian_forward.1} parent=0 // pred_region
    _
  $region37: #{hebbian_forward.1} parent=0 // pred_fallthru
    _
  // Predicated region
  $region38: #{hebbian_forward.1} parent=0 // pred_check
    _
  $region39: #{hebbian_forward.1} parent=0 // pred_check_branch
    %557 = sbr.rel (0) target = $region41
  $region40: #{hebbian_forward.1} parent=0 // pred_region
    _
  $region41: #{hebbian_forward.1} parent=0 // pred_fallthru
    _

</llo_original>
